<compile_context>
chip_gen: v5e
topology: v5e:2x2
jax: 0.10.0
libtpu: 0.0.40
codegen_flags: <defaults>
</compile_context>

<pallas_src>
import math

import jax
import jax.numpy as jnp
from jax.experimental import pallas as pl
from jax.experimental.pallas import tpu as pltpu


def _pos_emb_kernel(x_ref, wm_ref, o_ref):
    # x_ref : (TM, K+1)   K packed positions per row + a trailing ones column
    # wm_ref: (K+1, K*D)  block-diagonal weight rows + tiled-bias last row (constant)
    # o_ref : (TM, K*D)   lane-dense output tile
    # Single MXU contraction; bias is folded in via the ones column, so the VPU
    # only performs the final cast/store.
    o_ref[...] = jnp.dot(
        x_ref[...], wm_ref[...], preferred_element_type=jnp.float32
    ).astype(o_ref.dtype)


def _pack_factor(d_model):
    """Positions packed per output row so (K * d_model) % 128 == 0."""
    return 128 // math.gcd(d_model, 128)


def positional_embedding(x, weight, bias, *, target_block_bytes=8 * 1024 * 1024):
    """x: (B, S); weight: (d_model, 1); bias: (d_model,) -> (B, S, d_model)."""
    B, S = x.shape
    D = weight.shape[0]
    N = B * S
    dtype = x.dtype
    itemsize = jnp.dtype(dtype).itemsize
    # Sublane multiple for the row (second-to-last) block dim: 8 f32 / 16 bf16 / 32 int8.
    sub = max(8, 32 // itemsize)

    K = _pack_factor(D)
    KD = K * D

    # Wrapper-side padding so every row holds exactly K positions (keeps stores
    # lane-dense instead of masked); padded rows are sliced off at the end.
    N_pad = ((N + K - 1) // K) * K
    x_flat = x.reshape(N)
    if N_pad != N:
        x_flat = jnp.pad(x_flat, (0, N_pad - N))
    NR = N_pad // K
    x_packed = x_flat.reshape(NR, K)                                   # same memory order
    x_aug = jnp.concatenate([x_packed, jnp.ones((NR, 1), dtype=dtype)], axis=1)  # (NR, K+1)

    # Parameter prep (cheap, O(K*D)): block-diagonal weight expansion with the bias
    # folded in as the last row, so the kernel is a single dot with no extra adds.
    w = weight.reshape(D).astype(dtype)
    wm = (jnp.eye(K, dtype=dtype)[:, :, None] * w[None, None, :]).reshape(K, KD)
    b_row = jnp.tile(bias.reshape(1, D).astype(dtype), (1, K))          # (1, KD)
    wm_aug = jnp.concatenate([wm, b_row], axis=0)                       # (K+1, KD)

    # Row tile: ~8 MiB output blocks, multiple of the sublane count, but capped
    # near NR/4 so moderate inputs still get >= 4 grid steps (megacore + pipeline).
    row_bytes = KD * itemsize
    tm_cap = max(sub, (target_block_bytes // row_bytes) // sub * sub)
    if NR <= sub:
        tm = NR                                   # single full-extent block (always legal)
    else:
        quarter = max(sub, (NR // 4) // sub * sub)
        tm = min(tm_cap, quarter, NR)
    grid = (pl.cdiv(NR, tm),)

    cost = pl.CostEstimate(
        flops=2 * N_pad * D,
        transcendentals=0,
        bytes_accessed=(N_pad + N_pad * D) * itemsize,
    )

    out2 = pl.pallas_call(
        _pos_emb_kernel,
        out_shape=jax.ShapeDtypeStruct((NR, KD), dtype),
        grid_spec=pltpu.PrefetchScalarGridSpec(
            num_scalar_prefetch=0,
            grid=grid,
            in_specs=[
                pl.BlockSpec((tm, K + 1), lambda i: (i, 0)),   # packed rows + ones column
                pl.BlockSpec((K + 1, KD), lambda i: (0, 0)),   # shared weight+bias block
            ],
            out_specs=pl.BlockSpec((tm, KD), lambda i: (i, 0)),
        ),
        compiler_params=pltpu.CompilerParams(
            dimension_semantics=("parallel",),                 # megacore-shard rows (v7x)
            vmem_limit_bytes=48 * 1024 * 1024,                 # > v5e/v6e defaults, < v7x 64 MiB phys
        ),
        cost_estimate=cost,
    )(x_aug, wm_aug)

    # (NR, K*D) and (N_pad, D) share row-major element order -> free reshape, then
    # drop padded positions.
    out_flat = out2.reshape(N_pad, D)
    if N_pad != N:
        out_flat = out_flat[:N]
    return out_flat.reshape(B, S, D)


def _ref(x, weight, bias):
    return x[..., None] * weight[:, 0][None, None, :] + bias[None, None, :]


if __name__ == "__main__":
    key = jax.random.PRNGKey(0)

    # Check 1: D=32 exercises the lane-dense packing path (K=4, K*D=128).
    B, S, D = 2, 8, 32
    kx, kw, kb = jax.random.split(key, 3)
    x = jax.random.normal(kx, (B, S), dtype=jnp.float32)
    weight = jax.random.uniform(kw, (D, 1), dtype=jnp.float32, minval=-1.0, maxval=1.0)
    bias = jax.random.uniform(kb, (D,), dtype=jnp.float32, minval=-1.0, maxval=1.0)
    out = jax.block_until_ready(positional_embedding(x, weight, bias))
    assert out.shape == (B, S, D)
    assert jnp.allclose(out, _ref(x, weight, bias), atol=1e-5, rtol=1e-5), "mismatch (D=32)"

    # Check 2: D=128 exercises the already-lane-dense path (K=1) with a 2-step grid.
    B2, S2, D2 = 2, 8, 128
    kx2, kw2, kb2 = jax.random.split(jax.random.PRNGKey(1), 3)
    x2 = jax.random.normal(kx2, (B2, S2), dtype=jnp.float32)
    w2 = jax.random.uniform(kw2, (D2, 1), dtype=jnp.float32, minval=-1.0, maxval=1.0)
    b2 = jax.random.uniform(kb2, (D2,), dtype=jnp.float32, minval=-1.0, maxval=1.0)
    out2 = jax.block_until_ready(positional_embedding(x2, w2, b2))
    assert jnp.allclose(out2, _ref(x2, w2, b2), atol=1e-5, rtol=1e-5), "mismatch (D=128)"

    # Check 3: D=12 (K=32) with B*S not a multiple of K exercises the pad/slice path.
    B3, S3, D3 = 3, 5, 12
    kx3, kw3, kb3 = jax.random.split(jax.random.PRNGKey(2), 3)
    x3 = jax.random.normal(kx3, (B3, S3), dtype=jnp.float32)
    w3 = jax.random.uniform(kw3, (D3, 1), dtype=jnp.float32, minval=-1.0, maxval=1.0)
    b3 = jax.random.uniform(kb3, (D3,), dtype=jnp.float32, minval=-1.0, maxval=1.0)
    out3 = jax.block_until_ready(positional_embedding(x3, w3, b3))
    assert out3.shape == (B3, S3, D3)
    assert jnp.allclose(out3, _ref(x3, w3, b3), atol=1e-5, rtol=1e-5), "mismatch (D=12, padded)"

    print("KERNEL_OK")
</pallas_src>

<mosaic_0001>
module attributes {stable_mosaic.version = 11 : i64} {
  func.func @_pos_emb_kernel(%arg0: i32, %arg1: memref<4x5xf32, #tpu.memory_space<vmem>>, %arg2: memref<5x128xf32, #tpu.memory_space<vmem>>, %arg3: memref<4x128xf32, #tpu.memory_space<vmem>>) attributes {dimension_semantics = [#tpu.dimension_semantics<parallel>], iteration_bounds = array<i64: 1>, scalar_prefetch = 0 : i64, scratch_operands = 0 : i64, tpu.core_type = #tpu.core_type<tc>, window_params = [{transform_indices = @transform_0, window_bounds = array<i64: 4, 5>}, {pipeline_mode = #tpu.pipeline_mode<synchronous>, transform_indices = @transform_1, window_bounds = array<i64: 5, 128>}, {transform_indices = @transform_2, window_bounds = array<i64: 4, 128>}]} {
    %c0 = arith.constant 0 : index
    %c0_0 = arith.constant 0 : index
    %0 = vector.load %arg1[%c0, %c0_0] : memref<4x5xf32, #tpu.memory_space<vmem>>, vector<4x5xf32>
    %c0_1 = arith.constant 0 : index
    %c0_2 = arith.constant 0 : index
    %1 = vector.load %arg2[%c0_1, %c0_2] : memref<5x128xf32, #tpu.memory_space<vmem>>, vector<5x128xf32>
    %cst = arith.constant dense<0.000000e+00> : vector<4x128xf32>
    %2 = tpu.matmul %0, %1, %cst {dimension_numbers = #tpu.dot_dimension_numbers<[1], [0], [0], [1], [0, 0, 1, 1], [], []>} : vector<4x5xf32>, vector<5x128xf32>, vector<4x128xf32> -> vector<4x128xf32>
    %c0_3 = arith.constant 0 : index
    %c0_4 = arith.constant 0 : index
    %3 = vector.load %arg3[%c0_3, %c0_4] : memref<4x128xf32, #tpu.memory_space<vmem>>, vector<4x128xf32>
    tpu.vector_store %arg3[%c0_3, %c0_4], %2 {strides = array<i32>} : memref<4x128xf32, #tpu.memory_space<vmem>>, vector<4x128xf32>,
    return
  }
  func.func @transform_0(%arg0: i32) -> (i32, i32) {
    %c0_i32 = arith.constant 0 : i32
    %c0_i32_0 = arith.constant 0 : i32
    return %arg0, %c0_i32 : i32, i32
  }
  func.func @transform_1(%arg0: i32) -> (i32, i32) {
    %c0_i32 = arith.constant 0 : i32
    %c0_i32_0 = arith.constant 0 : i32
    %c0_i32_1 = arith.constant 0 : i32
    return %c0_i32, %c0_i32_0 : i32, i32
  }
  func.func @transform_2(%arg0: i32) -> (i32, i32) {
    %c0_i32 = arith.constant 0 : i32
    %c0_i32_0 = arith.constant 0 : i32
    return %arg0, %c0_i32 : i32, i32
  }
}

</mosaic_0001>

<llo_original>
// kernel: tpu_custom_call.1
$region0: #{tpu_custom_call.1}
  #allocation0 [shape = 'u32[]', space=smem, size = 0x4, offset = 0x4, fixed_abs, tag = 'smem constant byte address 0x4 - core index']
  #allocation1 [shape = 'u32[72,128]{1,0:T(1,128)}', space=vmem, size = 0x9000, scoped, tag = 'internal scratch']
  %s0 = inlined_call_operand.hbm [shape: f32[4,5], index: 0, kind: input, shape index: {}]
  %s1 = inlined_call_operand.hbm [shape: f32[5,128], index: 1, kind: input, shape index: {}]
  %s2 = inlined_call_operand.hbm [shape: f32[4,128], index: 2, kind: output, shape index: {}]
  %s3 = sld [smem:[#allocation0]]
  $region26: #{tpu_custom_call.1} parent=0
    _
  %s5 = ssub.s32 1, %s3
  %s6 = scalar_select 0, %s5, %s3
  $region1: #{tpu_custom_call.1} parent=0
    #allocation2 [shape = 'u8[2048]{0}', space=vmem, size = 0x800, scoped, tag = 'input window, operand 0, single buffered']
    #allocation3 [shape = 's32[1]{0}', space=sflag, size = 0x4, scoped, tag = 'scoped memory for tpu_custom_call.1']
    #allocation4 [shape = 's32[1]{0}', space=sflag, size = 0x4, scoped, tag = 'scoped memory for tpu_custom_call.1']
    #allocation5 [shape = 'u8[4096]{0}', space=vmem, size = 0x1000, scoped, tag = 'input window, operand 1, single buffered']
    #allocation6 [shape = 's32[1]{0}', space=sflag, size = 0x4, scoped, tag = 'scoped memory for tpu_custom_call.1']
    #allocation7 [shape = 'u8[2048]{0}', space=vmem, size = 0x800, scoped, tag = 'output window, operand 0, single buffered']
    %7 = vsyncpa [#allocation3], 0
    %8 = vsyncpa [#allocation6], 0
    %9 = vsyncpa [#allocation4], 0
    // Predicated region
    $region2: #{tpu_custom_call.1} parent=1 // pred_check
      _
    $region3: #{tpu_custom_call.1} parent=1 // pred_check_branch
      %11 = sbr.rel (0) target = $region5
    $region4: #{tpu_custom_call.1} parent=1 // pred_region
      %13 = vsyncadd [#allocation3], 0
      %s15 = sshll.u32 %s0, 4
      %s16 = int_to_ptr.hbm [resolvable:$true] %s15
      %s17 = sshll.u32 [#allocation2], 4
      %s18 = int_to_ptr.vmem [resolvable:$true] %s17
      %20 = dma.hbm_to_vmem [thread:$0]  %s16, 64, %s18, [#allocation3]
    $region5: #{tpu_custom_call.1} parent=1 // pred_fallthru
      _
    // Predicated region
    $region6: #{tpu_custom_call.1} parent=1 // pred_check
      _
    $region7: #{tpu_custom_call.1} parent=1 // pred_check_branch
      %22 = sbr.rel (0) target = $region9
    $region8: #{tpu_custom_call.1} parent=1 // pred_region
      %24 = vsyncadd [#allocation6], 0
      %s26 = sshll.u32 %s1, 4
      %s27 = int_to_ptr.hbm [resolvable:$true] %s26
      %s28 = sshll.u32 [#allocation5], 4
      %s29 = int_to_ptr.vmem [resolvable:$true] %s28
      %31 = dma.hbm_to_vmem [thread:$0]  %s27, 128, %s29, [#allocation6]
    $region9: #{tpu_custom_call.1} parent=1 // pred_fallthru
      _
    // Predicated region
    $region10: #{tpu_custom_call.1} parent=1 // pred_check
      _
    $region11: #{tpu_custom_call.1} parent=1 // pred_check_branch
      %33 = sbr.rel (0) target = $region13
    $region12: #{tpu_custom_call.1} parent=1 // pred_region
      %35 = dma.done [#allocation3], 64
    $region13: #{tpu_custom_call.1} parent=1 // pred_fallthru
      _
    // Predicated region
    $region14: #{tpu_custom_call.1} parent=1 // pred_check
      _
    $region15: #{tpu_custom_call.1} parent=1 // pred_check_branch
      %37 = sbr.rel (0) target = $region17
    $region16: #{tpu_custom_call.1} parent=1 // pred_region
      %39 = dma.done [#allocation6], 128
    $region17: #{tpu_custom_call.1} parent=1 // pred_fallthru
      _
    %v40 = vld [vmem:[#allocation2] sm:$0xf]
    %v41 = vld [vmem:[#allocation5] sm:$0x1f]
    %vm42 = vcmask 39936
    %v44 = vsel %vm42, %v40, 0
    %vm46 = vcmask 1044480
    %v48 = vsel %vm46, %v41, 0
    %50 = vmatpush.msra.mxu0 0.0
    %51 = vmatpush.msra.mxu0 0.0
    %52 = vmatpush.msra.mxu0 0.0
    %53 = vmatpush.msra.mxu0 0.0
    %54 = vmatpush.msra.mxu0 0.0
    %55 = vmatpush.msra.mxu0 0.0
    %56 = vmatpush.msra.mxu0 0.0
    %57 = vmatpush.msra.mxu0 0.0
    %58 = vmatpush.msra.mxu0 0.0
    %59 = vmatpush.msra.mxu0 0.0
    %60 = vmatpush.msra.mxu0 0.0
    %61 = vmatpush.msra.mxu0 0.0
    %62 = vmatpush.msra.mxu0 0.0
    %63 = vmatpush.msra.mxu0 0.0
    %64 = vmatpush.msra.mxu0 0.0
    %65 = vmatpush.msra.mxu0 %v48
    %66 = vmatmul.f32.gmra.mxu0 %v44
    %v67 = vpop.f32.mrf.mxu0
    %v68 = vadd.f32 0.0, %v67
    %69 = vdwg.mxu0
    %70 = vst [vmem:[#allocation7] sm:$0xf] %v68
    // Predicated region
    $region18: #{tpu_custom_call.1} parent=1 // pred_check
      _
    $region19: #{tpu_custom_call.1} parent=1 // pred_check_branch
      %72 = sbr.rel (0) target = $region21
    $region20: #{tpu_custom_call.1} parent=1 // pred_region
      %74 = vsyncadd [#allocation4], 0
      %s76 = sshll.u32 [#allocation7], 4
      %s77 = int_to_ptr.vmem [resolvable:$true] %s76
      %s78 = sshll.u32 %s2, 4
      %s79 = int_to_ptr.hbm [resolvable:$true] %s78
      %81 = dma.vmem_to_hbm [thread:$0]  %s77, 64, %s79, [#allocation4]
    $region21: #{tpu_custom_call.1} parent=1 // pred_fallthru
      _
    // Predicated region
    $region22: #{tpu_custom_call.1} parent=1 // pred_check
      _
    $region23: #{tpu_custom_call.1} parent=1 // pred_check_branch
      %83 = sbr.rel (0) target = $region25
    $region24: #{tpu_custom_call.1} parent=1 // pred_region
      %85 = dma.done [#allocation4], 64
    $region25: #{tpu_custom_call.1} parent=1 // pred_fallthru
      _
    %86 = vsyncpa [#allocation3], 1
    %87 = vsyncpa [#allocation6], 1
    %88 = vsyncpa [#allocation4], 1

</llo_original>
